<compile_context>
chip_gen: v6e
topology: v6e:2x2x1
jax: 0.10.0
libtpu: 0.0.40
codegen_flags: <defaults>
</compile_context>

<pallas_src>
import functools

import jax
import jax.numpy as jnp
from jax import lax
from jax.experimental import pallas as pl
from jax.experimental.pallas import tpu as pltpu

GAMMA = 1.0
ALPHA = 0.7

_LANES = 128
_SUBLANES = 8
_ROW_Q = 16          # row-tile quantum: multiple of bf16 sublane packing (16) and f32 (8)


def _round_up(x, m):
    return ((x + m - 1) // m) * m


def _tversky_kernel(pred_ref, true_ref, out_ref, *, batch, block_b):
    """One (block_b, C) batch tile; accumulates sum_i tl_i into this core's block."""
    c = pl.program_id(0)          # core axis (size 1 on v5e/v6e; >1 only for megacore)
    t = pl.program_id(1)          # batch tiles per core (accumulate axis)
    nt = pl.num_programs(1)

    # Zero this core's accumulator block on its first tile.
    @pl.when(t == 0)
    def _init():
        out_ref[...] = jnp.zeros_like(out_ref)

    logits = pred_ref[...].astype(jnp.float32)
    y_true = true_ref[...].astype(jnp.float32)

    # sigmoid(x) == 0.5 * tanh(0.5 * x) + 0.5 -> a single EUP push per vreg instead
    # of exp + reciprocal (two), halving pressure on the single EUP slot.
    pred_prob = 0.5 * jnp.tanh(0.5 * logits) + 0.5

    # TODO(synk): for C << 128 every vreg is mostly lane padding; on v7x (where this
    # kernel flips compute-bound) consider a flat lane-dense reshape + ones-matmul
    # row reduction, or a (C, B) input layout. Gate on bundle evidence.

    # true_pos = sum(p * y, dim=1)
    true_pos = jnp.sum(pred_prob * y_true, axis=1, keepdims=True)          # (TB, 1)
    numerator = true_pos + GAMMA

    # denominator = sum((1-alpha) * p^2 + alpha * y, dim=1) + gamma
    denom_terms = (1.0 - ALPHA) * (pred_prob * pred_prob) + ALPHA * y_true
    denominator = jnp.sum(denom_terms, axis=1, keepdims=True) + GAMMA      # (TB, 1)

    # num / den via EUP approx reciprocal + one Newton refinement (err ~ e0^2 << 1e-6).
    inv_den = pl.reciprocal(denominator, approx=True)
    inv_den = inv_den * (2.0 - denominator * inv_den)

    # (1 - num/den) ** 0.75 == sqrt(x * sqrt(x)).  No clamp: matches the reference
    # (NaN only for soft targets outside [0, 1], exactly like torch/jnp.power).
    base = 1.0 - numerator * inv_den
    tl_i = jnp.sqrt(base * jnp.sqrt(base))                                 # (TB, 1)

    # Mask rows past the true batch.  The ragged trailing block exposes unspecified
    # VMEM for those rows, but all reductions above are per-row, so any garbage is
    # confined to masked rows and zeroed here before the cross-row sum.
    row0 = (c * nt + t) * block_b
    rows = lax.broadcasted_iota(jnp.int32, tl_i.shape, 0) + row0
    tl_i = jnp.where(rows < batch, tl_i, 0.0)

    # Accumulate the scalar partial sum into this core's lane-dense (8, 128) block.
    out_ref[...] += jnp.full(out_ref.shape, jnp.sum(tl_i), jnp.float32)


def tversky_loss(y_pred, y_true, *, num_cores=1, cast_targets_bf16=True,
                 max_block_rows=None):
    """Pallas TverskyLoss forward. y_pred, y_true: (B, C). Returns scalar f32.

    * No wrapper-side padding: the trailing (ragged) batch tile is handled by the
      in-kernel row mask, so HBM traffic is exactly the two input arrays.
    * Targets are cast to bf16 by default (exact for {0,1} multi-label targets;
      pass cast_targets_bf16=False for soft labels).
    * Row-tile size is derived from the lane-padded VMEM footprint with a ~12 MiB
      in-flight budget; vmem_limit_bytes is set to match.
    * num_cores=1 by default (v5e/v6e are single-TensorCore).
      TODO(synk): on v7x pass num_cores=2 and verify the leading "parallel" axis
      actually shards across the two TensorCores (else switch it to CORE_PARALLEL).
    """
    assert y_pred.shape == y_true.shape and y_pred.ndim == 2
    B, C = y_pred.shape

    if cast_targets_bf16 and y_true.dtype == jnp.float32:
        y_true = y_true.astype(jnp.bfloat16)    # exact for 0/1 labels, halves target bytes

    pred_bytes = jnp.dtype(y_pred.dtype).itemsize
    true_bytes = jnp.dtype(y_true.dtype).itemsize
    c_pad = _round_up(C, _LANES)                # VMEM lane-pads the class axis to 128
    per_row_vmem = 2 * c_pad * (pred_bytes + true_bytes)   # 2 pipeline buffers per input

    # Row-tile cap from a ~12 MiB in-flight VMEM budget, <= 8192 rows, multiple of 16.
    vmem_budget = 12 * 1024 * 1024
    tb_cap = max(_ROW_Q, min(8192, vmem_budget // per_row_vmem))
    tb_cap = max(_ROW_Q, (tb_cap // _ROW_Q) * _ROW_Q)
    if max_block_rows is not None:
        tb_cap = max(_ROW_Q, min(tb_cap, (max_block_rows // _ROW_Q) * _ROW_Q))
    # TODO(synk): class-axis tiling for very large C (one (tb, C) tile must fit VMEM).

    rows_per_core = pl.cdiv(B, num_cores)
    if num_cores == 1 and rows_per_core <= tb_cap:
        tb = B                                   # single block: dims == full array dims
    elif rows_per_core <= tb_cap:
        tb = _round_up(rows_per_core, _ROW_Q)
    else:
        tb = tb_cap
    nt = pl.cdiv(rows_per_core, tb)
    last_blk = max(0, (B - 1) // tb)             # keep every DMA at least partly in-bounds

    def in_map(c, t):
        return (jnp.minimum(c * nt + t, last_blk), 0)

    in_spec = pl.BlockSpec((tb, C), in_map)

    in_flight = 2 * _round_up(tb, _ROW_Q) * c_pad * (pred_bytes + true_bytes)
    vmem_limit = int(min(64 * 1024 * 1024,
                         max(16 * 1024 * 1024, in_flight + 4 * 1024 * 1024)))

    out_elems = num_cores * _SUBLANES * _LANES
    cost = pl.CostEstimate(
        flops=8 * B * C,
        transcendentals=B * C,                   # one tanh per element
        bytes_accessed=B * C * (pred_bytes + true_bytes) + out_elems * 4,
    )

    out = pl.pallas_call(
        functools.partial(_tversky_kernel, batch=B, block_b=tb),
        out_shape=jax.ShapeDtypeStruct((num_cores * _SUBLANES, _LANES), jnp.float32),
        grid_spec=pltpu.PrefetchScalarGridSpec(
            num_scalar_prefetch=0,
            grid=(num_cores, nt),
            in_specs=[in_spec, in_spec],
            out_specs=pl.BlockSpec((_SUBLANES, _LANES), lambda c, t: (c, 0)),
        ),
        compiler_params=pltpu.CompilerParams(
            dimension_semantics=("parallel", "arbitrary"),
            vmem_limit_bytes=vmem_limit),
        cost_estimate=cost,
    )(y_pred, y_true)

    # Every element of core c's (8, 128) block equals that core's partial sum.
    partials = out[::_SUBLANES, 0]               # (num_cores,)
    return jnp.sum(partials) / jnp.float32(B)


def tversky_loss_reference(y_pred, y_true):
    """Pure-JAX reference mirroring the PyTorch forward exactly."""
    pred_prob = jax.nn.sigmoid(y_pred.astype(jnp.float32))
    y_true = y_true.astype(jnp.float32)
    true_pos = jnp.sum(pred_prob * y_true, axis=1)
    numerator = true_pos + GAMMA
    denominator = jnp.sum((1.0 - ALPHA) * pred_prob ** 2 + ALPHA * y_true,
                          axis=1) + GAMMA
    tl_i = jnp.power(1.0 - numerator / denominator, 0.75)
    return jnp.mean(tl_i)


if __name__ == "__main__":
    key = jax.random.PRNGKey(0)

    # (B, C) multi-label logits / targets (12-lead ECG classifier style).
    # Third case forces a small tile to exercise the multi-tile grid, the
    # accumulator across the "arbitrary" axis, and the ragged-trailing-block mask.
    cases = [
        ((16, 32), None),
        ((2500, 27), None),
        ((2500, 27), 512),
    ]
    for (B, C), max_rows in cases:
        key, k1, k2 = jax.random.split(key, 3)
        y_pred = jax.random.normal(k1, (B, C), dtype=jnp.float32)
        y_true = jax.random.bernoulli(k2, p=0.3, shape=(B, C)).astype(jnp.float32)

        loss = tversky_loss(y_pred, y_true, max_block_rows=max_rows)
        jax.block_until_ready(loss)

        ref = tversky_loss_reference(y_pred, y_true)
        assert jnp.allclose(loss, ref, atol=1e-4, rtol=1e-4), ((B, C), max_rows, loss, ref)

    print("KERNEL_OK")
</pallas_src>

<mosaic_0001>
module attributes {stable_mosaic.version = 11 : i64} {
  func.func @_tversky_kernel(%arg0: i32, %arg1: i32, %arg2: memref<16x32xf32, #tpu.memory_space<vmem>>, %arg3: memref<16x32xbf16, #tpu.memory_space<vmem>>, %arg4: memref<8x128xf32, #tpu.memory_space<vmem>>) attributes {dimension_semantics = [#tpu.dimension_semantics<parallel>, #tpu.dimension_semantics<arbitrary>], iteration_bounds = array<i64: 1, 1>, scalar_prefetch = 0 : i64, scratch_operands = 0 : i64, tpu.core_type = #tpu.core_type<tc>, window_params = [{transform_indices = @transform_0, window_bounds = array<i64: 16, 32>}, {transform_indices = @transform_1, window_bounds = array<i64: 16, 32>}, {transform_indices = @transform_2, window_bounds = array<i64: 8, 128>}]} {
    %c0_i32 = arith.constant 0 : i32
    %0 = arith.cmpi eq, %arg1, %c0_i32 : i32
    %1 = arith.extui %0 : i1 to i32
    %c0_i32_0 = arith.constant 0 : i32
    %2 = arith.cmpi ne, %1, %c0_i32_0 : i32
    scf.if %2 {
      %cst_21 = arith.constant 0.000000e+00 : f32
      %57 = vector.broadcast %cst_21 : f32 to vector<8x128xf32>
      %c0_22 = arith.constant 0 : index
      %c0_23 = arith.constant 0 : index
      %58 = vector.load %arg4[%c0_22, %c0_23] : memref<8x128xf32, #tpu.memory_space<vmem>>, vector<8x128xf32>
      tpu.vector_store %arg4[%c0_22, %c0_23], %57 {strides = array<i32>} : memref<8x128xf32, #tpu.memory_space<vmem>>, vector<8x128xf32>,
    } else {
    }
    %c0 = arith.constant 0 : index
    %c0_1 = arith.constant 0 : index
    %3 = vector.load %arg2[%c0, %c0_1] : memref<16x32xf32, #tpu.memory_space<vmem>>, vector<16x32xf32>
    %c0_2 = arith.constant 0 : index
    %c0_3 = arith.constant 0 : index
    %4 = vector.load %arg3[%c0_2, %c0_3] : memref<16x32xbf16, #tpu.memory_space<vmem>>, vector<16x32xbf16>
    %5 = arith.extf %4 : vector<16x32xbf16> to vector<16x32xf32>
    %cst = arith.constant 5.000000e-01 : f32
    %6 = vector.broadcast %cst : f32 to vector<16x32xf32>
    %7 = arith.mulf %6, %3 : vector<16x32xf32>
    %8 = math.tanh %7 : vector<16x32xf32>
    %cst_4 = arith.constant 5.000000e-01 : f32
    %9 = vector.broadcast %cst_4 : f32 to vector<16x32xf32>
    %10 = arith.mulf %9, %8 : vector<16x32xf32>
    %cst_5 = arith.constant 5.000000e-01 : f32
    %11 = vector.broadcast %cst_5 : f32 to vector<16x32xf32>
    %12 = arith.addf %10, %11 : vector<16x32xf32>
    %13 = arith.mulf %12, %5 : vector<16x32xf32>
    %cst_6 = arith.constant dense<0.000000e+00> : vector<16xf32>
    %14 = vector.multi_reduction <add>, %13, %cst_6 [1] : vector<16x32xf32> to vector<16xf32>
    %15 = vector.shape_cast %14 : vector<16xf32> to vector<16x1xf32>
    %cst_7 = arith.constant 1.000000e+00 : f32
    %16 = vector.broadcast %cst_7 : f32 to vector<16x1xf32>
    %17 = arith.addf %15, %16 : vector<16x1xf32>
    %18 = arith.mulf %12, %12 : vector<16x32xf32>
    %cst_8 = arith.constant 3.000000e-01 : f32
    %19 = vector.broadcast %cst_8 : f32 to vector<16x32xf32>
    %20 = arith.mulf %19, %18 : vector<16x32xf32>
    %cst_9 = arith.constant 0.699999988 : f32
    %21 = vector.broadcast %cst_9 : f32 to vector<16x32xf32>
    %22 = arith.mulf %21, %5 : vector<16x32xf32>
    %23 = arith.addf %20, %22 : vector<16x32xf32>
    %cst_10 = arith.constant dense<0.000000e+00> : vector<16xf32>
    %24 = vector.multi_reduction <add>, %23, %cst_10 [1] : vector<16x32xf32> to vector<16xf32>
    %25 = vector.shape_cast %24 : vector<16xf32> to vector<16x1xf32>
    %cst_11 = arith.constant 1.000000e+00 : f32
    %26 = vector.broadcast %cst_11 : f32 to vector<16x1xf32>
    %27 = arith.addf %25, %26 : vector<16x1xf32>
    %28 = tpu.reciprocal %27 {approx = true} : vector<16x1xf32> -> vector<16x1xf32>
    %29 = arith.mulf %27, %28 : vector<16x1xf32>
    %cst_12 = arith.constant 2.000000e+00 : f32
    %30 = vector.broadcast %cst_12 : f32 to vector<16x1xf32>
    %31 = arith.subf %30, %29 : vector<16x1xf32>
    %32 = arith.mulf %28, %31 : vector<16x1xf32>
    %33 = arith.mulf %17, %32 : vector<16x1xf32>
    %cst_13 = arith.constant 1.000000e+00 : f32
    %34 = vector.broadcast %cst_13 : f32 to vector<16x1xf32>
    %35 = arith.subf %34, %33 : vector<16x1xf32>
    %36 = math.sqrt %35 : vector<16x1xf32>
    %37 = arith.mulf %35, %36 : vector<16x1xf32>
    %38 = math.sqrt %37 : vector<16x1xf32>
    %c1_i32 = arith.constant 1 : i32
    %39 = arith.muli %arg0, %c1_i32 : i32
    %40 = arith.addi %39, %arg1 : i32
    %c16_i32 = arith.constant 16 : i32
    %41 = arith.muli %40, %c16_i32 : i32
    %42 = tpu.iota {dimensions = array<i32: 0>} : vector<16x1xi32>
    %43 = vector.broadcast %41 : i32 to vector<16x1xi32>
    %44 = arith.addi %42, %43 : vector<16x1xi32>
    %c16_i32_14 = arith.constant 16 : i32
    %45 = vector.broadcast %c16_i32_14 : i32 to vector<16x1xi32>
    %46 = arith.cmpi slt, %44, %45 : vector<16x1xi32>
    %cst_15 = arith.constant 0.000000e+00 : f32
    %47 = vector.broadcast %cst_15 : f32 to vector<16x1xf32>
    %48 = arith.select %46, %38, %47 : vector<16x1xi1>, vector<16x1xf32>
    %c0_16 = arith.constant 0 : index
    %c0_17 = arith.constant 0 : index
    %49 = vector.load %arg4[%c0_16, %c0_17] : memref<8x128xf32, #tpu.memory_space<vmem>>, vector<8x128xf32>
    %50 = vector.shape_cast %48 : vector<16x1xf32> to vector<1x16x1xf32>
    %cst_18 = arith.constant dense<0.000000e+00> : vector<1xf32>
    %51 = vector.multi_reduction <add>, %50, %cst_18 [1, 2] : vector<1x16x1xf32> to vector<1xf32>
    %52 = vector.shape_cast %51 : vector<1xf32> to vector<1x1x1xf32>
    %53 = vector.extract %52[0, 0, 0] : f32 from vector<1x1x1xf32>
    %54 = vector.broadcast %53 : f32 to vector<8x128xf32>
    %55 = arith.addf %49, %54 : vector<8x128xf32>
    %c0_19 = arith.constant 0 : index
    %c0_20 = arith.constant 0 : index
    %56 = vector.load %arg4[%c0_19, %c0_20] : memref<8x128xf32, #tpu.memory_space<vmem>>, vector<8x128xf32>
    tpu.vector_store %arg4[%c0_19, %c0_20], %55 {strides = array<i32>} : memref<8x128xf32, #tpu.memory_space<vmem>>, vector<8x128xf32>,
    return
  }
  func.func @transform_0(%arg0: i32, %arg1: i32) -> (i32, i32) {
    %c1_i32 = arith.constant 1 : i32
    %0 = arith.muli %arg0, %c1_i32 : i32
    %1 = arith.addi %0, %arg1 : i32
    %c0_i32 = arith.constant 0 : i32
    %2 = arith.minsi %1, %c0_i32 : i32
    %c0_i32_0 = arith.constant 0 : i32
    %c0_i32_1 = arith.constant 0 : i32
    return %2, %c0_i32_0 : i32, i32
  }
  func.func @transform_1(%arg0: i32, %arg1: i32) -> (i32, i32) {
    %c1_i32 = arith.constant 1 : i32
    %0 = arith.muli %arg0, %c1_i32 : i32
    %1 = arith.addi %0, %arg1 : i32
    %c0_i32 = arith.constant 0 : i32
    %2 = arith.minsi %1, %c0_i32 : i32
    %c0_i32_0 = arith.constant 0 : i32
    %c0_i32_1 = arith.constant 0 : i32
    return %2, %c0_i32_0 : i32, i32
  }
  func.func @transform_2(%arg0: i32, %arg1: i32) -> (i32, i32) {
    %c0_i32 = arith.constant 0 : i32
    %c0_i32_0 = arith.constant 0 : i32
    return %arg0, %c0_i32 : i32, i32
  }
}

</mosaic_0001>

<llo_original>
// kernel: tpu_custom_call.1
$region0: #{tpu_custom_call.1}
  #allocation0 [shape = 'u32[]', space=smem, size = 0x4, offset = 0x4, fixed_abs, tag = 'smem constant byte address 0x4 - core index']
  #allocation1 [shape = 'u32[144,128]{1,0:T(1,128)}', space=vmem, size = 0x12000, scoped, tag = 'internal scratch']
  %s0 = inlined_call_operand.hbm [shape: f32[16,32], index: 0, kind: input, shape index: {}]
  %s1 = inlined_call_operand.hbm [shape: bf16[16,32], index: 1, kind: input, shape index: {}]
  %s2 = inlined_call_operand.hbm [shape: f32[8,128], index: 2, kind: output, shape index: {}]
  %s3 = sld [smem:[#allocation0]]
  $region30: #{tpu_custom_call.1} parent=0
    _
  %s5 = ssub.s32 1, %s3
  %s6 = scalar_select 0, %s5, %s3
  $region1: #{tpu_custom_call.1} parent=0
    #allocation2 [shape = 'u8[8192]{0}', space=vmem, size = 0x2000, scoped, tag = 'input window, operand 0, single buffered']
    #allocation3 [shape = 's32[1]{0}', space=sflag, size = 0x4, scoped, tag = 'scoped memory for tpu_custom_call.1']
    #allocation4 [shape = 's32[1]{0}', space=sflag, size = 0x4, scoped, tag = 'scoped memory for tpu_custom_call.1']
    #allocation5 [shape = 'u8[4096]{0}', space=vmem, size = 0x1000, scoped, tag = 'input window, operand 1, single buffered']
    #allocation6 [shape = 's32[1]{0}', space=sflag, size = 0x4, scoped, tag = 'scoped memory for tpu_custom_call.1']
    #allocation7 [shape = 'u8[4096]{0}', space=vmem, size = 0x1000, scoped, tag = 'output window, operand 0, single buffered']
    %7 = vsyncpa [#allocation3], 0
    %8 = vsyncpa [#allocation6], 0
    %9 = vsyncpa [#allocation4], 0
    // Predicated region
    $region2: #{tpu_custom_call.1} parent=1 // pred_check
      _
    $region3: #{tpu_custom_call.1} parent=1 // pred_check_branch
      %11 = sbr.rel (0) target = $region5
    $region4: #{tpu_custom_call.1} parent=1 // pred_region
      %s12 = sadd.s32 0, 0
      %p13 = scmp.lt.s32.totalorder %s12, 0
      %s14 = scalar_select %p13, %s12, 0
      %s15 = smul.u32 2, %s14
      %s17 = ssub.s32 256, 256
      %18 = vsyncadd [#allocation3], %s17
      %s19 = smul.addr %s15, 128
      %s20 = scalar_lea.hbm %s0, %s19
      %s21 = sshll.u32 [#allocation2], 4
      %s22 = int_to_ptr.vmem [resolvable:$true] %s21
      %27 = dma.hbm_to_vmem [thread:$0]  %s20, 256, %s22, [#allocation3], 128, 128, 8
    $region5: #{tpu_custom_call.1} parent=1 // pred_fallthru
      _
    // Predicated region
    $region6: #{tpu_custom_call.1} parent=1 // pred_check
      _
    $region7: #{tpu_custom_call.1} parent=1 // pred_check_branch
      %29 = sbr.rel (0) target = $region9
    $region8: #{tpu_custom_call.1} parent=1 // pred_region
      %s30 = sadd.s32 0, 0
      %p31 = scmp.lt.s32.totalorder %s30, 0
      %s32 = scalar_select %p31, %s30, 0
      %s33 = smul.u32 2, %s32
      %s35 = ssub.s32 128, 128
      %36 = vsyncadd [#allocation6], %s35
      %s37 = smul.addr %s33, 64
      %s38 = scalar_lea.hbm %s1, %s37
      %s39 = sshll.u32 [#allocation5], 4
      %s40 = int_to_ptr.vmem [resolvable:$true] %s39
      %45 = dma.hbm_to_vmem [thread:$0]  %s38, 128, %s40, [#allocation6], 64, 64, 4
    $region9: #{tpu_custom_call.1} parent=1 // pred_fallthru
      _
    // Predicated region
    $region10: #{tpu_custom_call.1} parent=1 // pred_check
      _
    $region11: #{tpu_custom_call.1} parent=1 // pred_check_branch
      %47 = sbr.rel (0) target = $region13
    $region12: #{tpu_custom_call.1} parent=1 // pred_region
      %48 = dma.done [#allocation3], 256
    $region13: #{tpu_custom_call.1} parent=1 // pred_fallthru
      _
    // Predicated region
    $region14: #{tpu_custom_call.1} parent=1 // pred_check
      _
    $region15: #{tpu_custom_call.1} parent=1 // pred_check_branch
      %50 = sbr.rel (0) target = $region17
    $region16: #{tpu_custom_call.1} parent=1 // pred_region
      %51 = dma.done [#allocation6], 128
    $region17: #{tpu_custom_call.1} parent=1 // pred_fallthru
      _
    %s52 = sadd.s32 0, 0
    %p53 = scmp.lt.s32.totalorder %s52, 0
    %s54 = scalar_select %p53, %s52, 0
    %s55 = smul.u32 2, %s54
    %s56 = sadd.s32 0, 0
    %p57 = scmp.lt.s32.totalorder %s56, 0
    %s58 = scalar_select %p57, %s56, 0
    %s59 = smul.u32 2, %s58
    %p60 = scmp.eq.s32.totalorder 0, 0
    // Predicated region
    $region18: #{tpu_custom_call.1} parent=1 // pred_check
      %p61 = pneg %p60
    $region19: #{tpu_custom_call.1} parent=1 // pred_check_branch
      %63 = sbr.rel (%p61) target = $region21
    $region20: #{tpu_custom_call.1} parent=1 // pred_region
      %64 = vst [vmem:[#allocation7] sm:$0xff] 0.0
    $region21: #{tpu_custom_call.1} parent=1 // pred_fallthru
      _
    %v65 = vld [vmem:[#allocation2] sm:$0xff]
    %v66 = vld [vmem:[#allocation2 + $0x8] sm:$0xff]
    %v67 = vld [vmem:[#allocation5] sm:$0xf]
    %v68 = vld [vmem:[#allocation5 + $0x4] sm:$0xf]
    %v69 = vunpack.c.l.bf16 %v67
    %v70 = vunpack.c.l.bf16 %v68
    %v71 = vmul.f32 %v65, 0.5
    %v72 = vmul.f32 %v66, 0.5
    %v73 = vtanh.pop %v71
    %v74 = vtanh.pop %v72
    %v75 = vmul.f32 %v73, 0.5
    %v76 = vmul.f32 %v74, 0.5
    %v77 = vadd.f32 %v75, 0.5
    %v78 = vadd.f32 %v76, 0.5
    %v79 = vmul.f32 %v77, %v69
    %v80 = vmul.f32 %v78, %v70
    %vm81 = vcmask 261120
    %v82 = vsel %vm81, %v79, 0.0
    %83 = vadd.xlane.f32.xlu0 %v82
    %v84 = vpop.xlane.xlu0 %83
    %v85 = vsel %vm81, %v80, 0.0
    %86 = vadd.xlane.f32.xlu0 %v85
    %v87 = vpop.xlane.xlu0 %86
    %v88 = vadd.f32 %v84, 1.0
    %v89 = vadd.f32 %v87, 1.0
    %v90 = vmul.f32 %v77, %v77
    %v91 = vmul.f32 %v78, %v78
    %v92 = vmul.f32 %v90, 0.3
    %v93 = vmul.f32 %v91, 0.3
    %v94 = vmul.f32 %v69, 0.7
    %v95 = vmul.f32 %v70, 0.7
    %v96 = vadd.f32 %v92, %v94
    %v97 = vadd.f32 %v93, %v95
    %v98 = vsel %vm81, %v96, 0.0
    %99 = vadd.xlane.f32.xlu0 %v98
    %v100 = vpop.xlane.xlu0 %99
    %v101 = vsel %vm81, %v97, 0.0
    %102 = vadd.xlane.f32.xlu0 %v101
    %v103 = vpop.xlane.xlu0 %102
    %v104 = vadd.f32 %v100, 1.0
    %v105 = vadd.f32 %v103, 1.0
    %v106 = vrcp.pop %v104
    %v107 = vrcp.pop %v105
    %v108 = vmul.f32 %v104, %v106
    %v109 = vmul.f32 %v105, %v107
    %v110 = vsub.f32 2.0, %v108
    %v111 = vsub.f32 2.0, %v109
    %v112 = vmul.f32 %v106, %v110
    %v113 = vmul.f32 %v107, %v111
    %v114 = vmul.f32 %v88, %v112
    %v115 = vmul.f32 %v89, %v113
    %v116 = vsub.f32 1.0, %v114
    %v117 = vsub.f32 1.0, %v115
    %v118 = vrsqrt.pop %v116
    %v119 = vmul.f32 %v116, %v118
    %vm120 = vcmp.eq.f32.partialorder %v116, inf
    %v121 = vsel %vm120, %v116, %v119
    %vm122 = vcmp.eq.f32.partialorder %v116, 0.0
    %v123 = vand.u32 %v116, 2147483648
    %v124 = vsel %vm122, %v123, %v121
    %v125 = vrsqrt.pop %v117
    %v126 = vmul.f32 %v117, %v125
    %vm127 = vcmp.eq.f32.partialorder %v117, inf
    %v128 = vsel %vm127, %v117, %v126
    %vm129 = vcmp.eq.f32.partialorder %v117, 0.0
    %v130 = vand.u32 %v117, 2147483648
    %v131 = vsel %vm129, %v130, %v128
    %v132 = vmul.f32 %v116, %v124
    %v133 = vmul.f32 %v117, %v131
    %v134 = vrsqrt.pop %v132
    %v135 = vmul.f32 %v132, %v134
    %vm136 = vcmp.eq.f32.partialorder %v132, inf
    %v137 = vsel %vm136, %v132, %v135
    %vm138 = vcmp.eq.f32.partialorder %v132, 0.0
    %v139 = vand.u32 %v132, 2147483648
    %v140 = vsel %vm138, %v139, %v137
    %v141 = vrsqrt.pop %v133
    %v142 = vmul.f32 %v133, %v141
    %vm143 = vcmp.eq.f32.partialorder %v133, inf
    %v144 = vsel %vm143, %v133, %v142
    %vm145 = vcmp.eq.f32.partialorder %v133, 0.0
    %v146 = vand.u32 %v133, 2147483648
    %v147 = vsel %vm145, %v146, %v144
    %s148 = sadd.s32 0, 0
    %s149 = smul.u32 %s148, 16
    %v150 = vlaneseq
    %v151 = vshrl.u32 %v150, 7
    %v152 = vadd.s32 %v151, 8
    %v153 = vstv %s149
    %v154 = vadd.s32 %v151, %v153
    %v155 = vadd.s32 %v152, %v153
    %vm156 = vcmp.lt.s32.totalorder %v154, 16
    %vm157 = vcmp.lt.s32.totalorder %v155, 16
    %v158 = vsel %vm156, %v140, 0.0
    %v159 = vsel %vm157, %v147, 0.0
    %v160 = vld [vmem:[#allocation7] sm:$0xff]
    %vm161 = vcmask 7168
    %v162 = vsel %vm161, %v158, 0.0
    %v163 = vsel %vm161, %v159, 0.0
    %v164 = vadd.f32 %v162, %v163
    %165 = vadd.xlane.f32.xlu0 %v164
    %v166 = vpop.xlane.xlu0 %165
    %v167 = vrot.slane %v166, 4
    %v168 = vadd.f32 %v166, %v167
    %v169 = vrot.slane %v168, 2
    %v170 = vadd.f32 %v168, %v169
    %v171 = vrot.slane %v170, 1
    %v172 = vadd.f32 %v170, %v171
    %s173 = vtos %v172
    %v174 = vstv %s173
    %v175 = vadd.f32 %v160, %v174
    %176 = vst [vmem:[#allocation7] sm:$0xff] %v175
    // Predicated region
    $region22: #{tpu_custom_call.1} parent=1 // pred_check
      _
    $region23: #{tpu_custom_call.1} parent=1 // pred_check_branch
      %178 = sbr.rel (0) target = $region25
    $region24: #{tpu_custom_call.1} parent=1 // pred_region
      %s180 = ssub.s32 128, 128
      %181 = vsyncadd [#allocation4], %s180
      %s183 = sshll.u32 [#allocation7], 4
      %s184 = int_to_ptr.vmem [resolvable:$true] %s183
      %186 = dma.vmem_to_hbm [thread:$0]  %s184, 128, %s2, [#allocation4]
    $region25: #{tpu_custom_call.1} parent=1 // pred_fallthru
      _
    // Predicated region
    $region26: #{tpu_custom_call.1} parent=1 // pred_check
      _
    $region27: #{tpu_custom_call.1} parent=1 // pred_check_branch
      %188 = sbr.rel (0) target = $region29
    $region28: #{tpu_custom_call.1} parent=1 // pred_region
      %189 = dma.done [#allocation4], 128
    $region29: #{tpu_custom_call.1} parent=1 // pred_fallthru
      _
    %190 = vsyncpa [#allocation3], 1
    %191 = vsyncpa [#allocation6], 1
    %192 = vsyncpa [#allocation4], 1

</llo_original>
